<compile_context>
chip_gen: v6e
topology: v6e:2x2x1
jax: 0.10.0
libtpu: 0.0.40
codegen_flags: <defaults>
</compile_context>

<pallas_src>
import jax
import jax.numpy as jnp
from jax.experimental import pallas as pl
from jax.experimental.pallas import tpu as pltpu

LANE = 128


def _round_up(x, m):
    return ((x + m - 1) // m) * m


def qnetwork_kernel(x_ref,
                    w1_ref, b1_ref,
                    w2_ref, b2_ref,
                    w3_ref, b3_ref,
                    w4_ref, b4_ref,
                    w5_ref, b5_ref,
                    out_ref):
    """Fused forward pass for one batch tile, feature-major layout.

    x_ref:   (state_size, TB)         -- batch on lanes
    wN_ref:  (out_features, in_features)  (PyTorch layout)
    bN_ref:  (out_features, 1)
    out_ref: (action_size, TB)
    """
    h = x_ref[...]

    h = jnp.dot(w1_ref[...], h, preferred_element_type=jnp.float32) + b1_ref[...]
    h = jnp.maximum(h, 0.0)

    h = jnp.dot(w2_ref[...], h, preferred_element_type=jnp.float32) + b2_ref[...]
    h = jnp.maximum(h, 0.0)

    h = jnp.dot(w3_ref[...], h, preferred_element_type=jnp.float32) + b3_ref[...]
    h = jnp.maximum(h, 0.0)

    h = jnp.dot(w4_ref[...], h, preferred_element_type=jnp.float32) + b4_ref[...]
    h = jnp.maximum(h, 0.0)

    h = jnp.dot(w5_ref[...], h, preferred_element_type=jnp.float32) + b5_ref[...]

    out_ref[...] = h.astype(out_ref.dtype)


def qnetwork_forward(x, params, *, block_batch=2048):
    """Run the fused QNetwork kernel.

    x: (B, state_size) float32
    params: list of (W, b) with W: (out_features, in_features) (PyTorch layout),
            b: (out_features, 1)
    returns: (B, action_size) float32
    """
    B, state_size = x.shape
    action_size = params[-1][0].shape[0]

    # ---- Batch tiling: pad batch only to a lane multiple (128). ----
    block_batch = _round_up(max(block_batch, LANE), LANE)
    B128 = _round_up(B, LANE)
    if B128 <= block_batch:
        # Single grid step: no per-step overhead, no wasted extra tile.
        # (On v7x this leaves one TC idle, which is the right latency tradeoff
        #  for small batches.)
        TB = B128
        grid_n = 1
    else:
        # Streaming path: equal 128-aligned tiles, >=2 steps so the "parallel"
        # batch axis can shard across v7x's two TensorCores.
        grid_n = -(-B128 // block_batch)          # ceil div
        TB = _round_up(-(-B128 // grid_n), LANE)  # smallest equal 128-aligned tile
    B_pad = grid_n * TB

    # Feature-major activations: (state_size, B_pad), batch on lanes.
    xT = x.T
    if B_pad != B:
        xT = jnp.pad(xT, ((0, 0), (0, B_pad - B)))

    flat_params = []
    # x: one (state_size, TB) tile per grid step (sublane dim == full array dim).
    in_specs = [pl.BlockSpec((state_size, TB), lambda i: (0, i))]
    # weights/biases: full-array blocks, block (0, 0) every step -> VMEM-resident.
    for w, b in params:
        flat_params.append(w)
        flat_params.append(b)
        in_specs.append(pl.BlockSpec(w.shape, lambda i: (0, 0)))
        in_specs.append(pl.BlockSpec(b.shape, lambda i: (0, 0)))

    out_specs = pl.BlockSpec((action_size, TB), lambda i: (0, i))

    out = pl.pallas_call(
        qnetwork_kernel,
        out_shape=jax.ShapeDtypeStruct((action_size, B_pad), jnp.float32),
        grid=(grid_n,),
        in_specs=in_specs,
        out_specs=out_specs,
        compiler_params=pltpu.CompilerParams(
            dimension_semantics=("parallel",)),
    )(xT, *flat_params)

    # Slice away batch padding and return in the caller's (B, action_size) layout.
    return out[:, :B].T


def init_qnetwork_params(state_size, action_size, seed=0):
    """Deterministic init mirroring nn.Linear default (uniform +-1/sqrt(fan_in)).

    Weights are kept in native PyTorch (out_features, in_features) layout;
    biases are stored as (out_features, 1) for the lane-splat bias add.
    """
    dims = [
        (state_size, state_size * 4),
        (state_size * 4, state_size * 8),
        (state_size * 8, action_size * 8),
        (action_size * 8, action_size * 4),
        (action_size * 4, action_size),
    ]
    key = jax.random.PRNGKey(seed)
    params = []
    for (fan_in, fan_out) in dims:
        key, kw, kb = jax.random.split(key, 3)
        bound = 1.0 / jnp.sqrt(float(fan_in))
        w = jax.random.uniform(kw, (fan_out, fan_in), jnp.float32, -bound, bound)
        b = jax.random.uniform(kb, (fan_out, 1), jnp.float32, -bound, bound)
        params.append((w, b))
    return params


def qnetwork_reference(x, params):
    """Pure-JAX reference for correctness checking (batch-major, like PyTorch)."""
    h = x
    for i, (w, b) in enumerate(params):
        h = h @ w.T + b[:, 0]
        if i < len(params) - 1:
            h = jnp.maximum(h, 0.0)
    return h


if __name__ == "__main__":
    state_size = 8
    action_size = 4

    params = init_qnetwork_params(state_size, action_size, seed=0)
    key = jax.random.PRNGKey(0)
    k1, k2, k3 = jax.random.split(key, 3)

    # Small batch (matches the module's typical single-state call pattern).
    x_small = jax.random.normal(k1, (2, state_size), dtype=jnp.float32)
    out_small = jax.block_until_ready(qnetwork_forward(x_small, params))
    ref_small = qnetwork_reference(x_small, params)
    assert out_small.shape == (2, action_size)
    assert jnp.allclose(out_small, ref_small, atol=1e-4, rtol=1e-4), \
        "small-batch mismatch vs reference"

    # Non-128-multiple batch exercises the single-tile padding path (pads to 384).
    x_mid = jax.random.normal(k2, (300, state_size), dtype=jnp.float32)
    out_mid = jax.block_until_ready(qnetwork_forward(x_mid, params))
    ref_mid = qnetwork_reference(x_mid, params)
    assert out_mid.shape == (300, action_size)
    assert jnp.allclose(out_mid, ref_mid, atol=1e-4, rtol=1e-4), \
        "mid-batch mismatch vs reference"

    # Large batch exercises the multi-step streaming grid (parallel axis).
    x_big = jax.random.normal(k3, (5000, state_size), dtype=jnp.float32)
    out_big = jax.block_until_ready(qnetwork_forward(x_big, params, block_batch=2048))
    ref_big = qnetwork_reference(x_big, params)
    assert out_big.shape == (5000, action_size)
    assert jnp.allclose(out_big, ref_big, atol=1e-4, rtol=1e-4), \
        "large-batch mismatch vs reference"

    print("KERNEL_OK")
</pallas_src>

<mosaic_0001>
module attributes {stable_mosaic.version = 11 : i64} {
  func.func @qnetwork_kernel(%arg0: i32, %arg1: memref<8x128xf32, #tpu.memory_space<vmem>>, %arg2: memref<32x8xf32, #tpu.memory_space<vmem>>, %arg3: memref<32x1xf32, #tpu.memory_space<vmem>>, %arg4: memref<64x32xf32, #tpu.memory_space<vmem>>, %arg5: memref<64x1xf32, #tpu.memory_space<vmem>>, %arg6: memref<32x64xf32, #tpu.memory_space<vmem>>, %arg7: memref<32x1xf32, #tpu.memory_space<vmem>>, %arg8: memref<16x32xf32, #tpu.memory_space<vmem>>, %arg9: memref<16x1xf32, #tpu.memory_space<vmem>>, %arg10: memref<4x16xf32, #tpu.memory_space<vmem>>, %arg11: memref<4x1xf32, #tpu.memory_space<vmem>>, %arg12: memref<4x128xf32, #tpu.memory_space<vmem>>) attributes {dimension_semantics = [#tpu.dimension_semantics<parallel>], iteration_bounds = array<i64: 1>, scalar_prefetch = 0 : i64, scratch_operands = 0 : i64, tpu.core_type = #tpu.core_type<tc>, window_params = [{transform_indices = @transform_0, window_bounds = array<i64: 8, 128>}, {pipeline_mode = #tpu.pipeline_mode<synchronous>, transform_indices = @transform_1, window_bounds = array<i64: 32, 8>}, {pipeline_mode = #tpu.pipeline_mode<synchronous>, transform_indices = @transform_2, window_bounds = array<i64: 32, 1>}, {pipeline_mode = #tpu.pipeline_mode<synchronous>, transform_indices = @transform_3, window_bounds = array<i64: 64, 32>}, {pipeline_mode = #tpu.pipeline_mode<synchronous>, transform_indices = @transform_4, window_bounds = array<i64: 64, 1>}, {pipeline_mode = #tpu.pipeline_mode<synchronous>, transform_indices = @transform_5, window_bounds = array<i64: 32, 64>}, {pipeline_mode = #tpu.pipeline_mode<synchronous>, transform_indices = @transform_6, window_bounds = array<i64: 32, 1>}, {pipeline_mode = #tpu.pipeline_mode<synchronous>, transform_indices = @transform_7, window_bounds = array<i64: 16, 32>}, {pipeline_mode = #tpu.pipeline_mode<synchronous>, transform_indices = @transform_8, window_bounds = array<i64: 16, 1>}, {pipeline_mode = #tpu.pipeline_mode<synchronous>, transform_indices = @transform_9, window_bounds = array<i64: 4, 16>}, {pipeline_mode = #tpu.pipeline_mode<synchronous>, transform_indices = @transform_10, window_bounds = array<i64: 4, 1>}, {transform_indices = @transform_11, window_bounds = array<i64: 4, 128>}]} {
    %c0 = arith.constant 0 : index
    %c0_0 = arith.constant 0 : index
    %0 = vector.load %arg1[%c0, %c0_0] : memref<8x128xf32, #tpu.memory_space<vmem>>, vector<8x128xf32>
    %c0_1 = arith.constant 0 : index
    %c0_2 = arith.constant 0 : index
    %1 = vector.load %arg2[%c0_1, %c0_2] : memref<32x8xf32, #tpu.memory_space<vmem>>, vector<32x8xf32>
    %cst = arith.constant dense<0.000000e+00> : vector<32x128xf32>
    %2 = tpu.matmul %1, %0, %cst {dimension_numbers = #tpu.dot_dimension_numbers<[1], [0], [0], [1], [0, 0, 1, 1], [], []>} : vector<32x8xf32>, vector<8x128xf32>, vector<32x128xf32> -> vector<32x128xf32>
    %c0_3 = arith.constant 0 : index
    %c0_4 = arith.constant 0 : index
    %3 = vector.load %arg3[%c0_3, %c0_4] : memref<32x1xf32, #tpu.memory_space<vmem>>, vector<32x1xf32>
    %4 = vector.broadcast %3 : vector<32x1xf32> to vector<32x128xf32>
    %5 = arith.addf %2, %4 : vector<32x128xf32>
    %cst_5 = arith.constant 0.000000e+00 : f32
    %6 = vector.broadcast %cst_5 : f32 to vector<32x128xf32>
    %7 = arith.maximumf %5, %6 : vector<32x128xf32>
    %c0_6 = arith.constant 0 : index
    %c0_7 = arith.constant 0 : index
    %8 = vector.load %arg4[%c0_6, %c0_7] : memref<64x32xf32, #tpu.memory_space<vmem>>, vector<64x32xf32>
    %cst_8 = arith.constant dense<0.000000e+00> : vector<64x128xf32>
    %9 = tpu.matmul %8, %7, %cst_8 {dimension_numbers = #tpu.dot_dimension_numbers<[1], [0], [0], [1], [0, 0, 1, 1], [], []>} : vector<64x32xf32>, vector<32x128xf32>, vector<64x128xf32> -> vector<64x128xf32>
    %c0_9 = arith.constant 0 : index
    %c0_10 = arith.constant 0 : index
    %10 = vector.load %arg5[%c0_9, %c0_10] : memref<64x1xf32, #tpu.memory_space<vmem>>, vector<64x1xf32>
    %11 = vector.broadcast %10 : vector<64x1xf32> to vector<64x128xf32>
    %12 = arith.addf %9, %11 : vector<64x128xf32>
    %cst_11 = arith.constant 0.000000e+00 : f32
    %13 = vector.broadcast %cst_11 : f32 to vector<64x128xf32>
    %14 = arith.maximumf %12, %13 : vector<64x128xf32>
    %c0_12 = arith.constant 0 : index
    %c0_13 = arith.constant 0 : index
    %15 = vector.load %arg6[%c0_12, %c0_13] : memref<32x64xf32, #tpu.memory_space<vmem>>, vector<32x64xf32>
    %cst_14 = arith.constant dense<0.000000e+00> : vector<32x128xf32>
    %16 = tpu.matmul %15, %14, %cst_14 {dimension_numbers = #tpu.dot_dimension_numbers<[1], [0], [0], [1], [0, 0, 1, 1], [], []>} : vector<32x64xf32>, vector<64x128xf32>, vector<32x128xf32> -> vector<32x128xf32>
    %c0_15 = arith.constant 0 : index
    %c0_16 = arith.constant 0 : index
    %17 = vector.load %arg7[%c0_15, %c0_16] : memref<32x1xf32, #tpu.memory_space<vmem>>, vector<32x1xf32>
    %18 = vector.broadcast %17 : vector<32x1xf32> to vector<32x128xf32>
    %19 = arith.addf %16, %18 : vector<32x128xf32>
    %cst_17 = arith.constant 0.000000e+00 : f32
    %20 = vector.broadcast %cst_17 : f32 to vector<32x128xf32>
    %21 = arith.maximumf %19, %20 : vector<32x128xf32>
    %c0_18 = arith.constant 0 : index
    %c0_19 = arith.constant 0 : index
    %22 = vector.load %arg8[%c0_18, %c0_19] : memref<16x32xf32, #tpu.memory_space<vmem>>, vector<16x32xf32>
    %cst_20 = arith.constant dense<0.000000e+00> : vector<16x128xf32>
    %23 = tpu.matmul %22, %21, %cst_20 {dimension_numbers = #tpu.dot_dimension_numbers<[1], [0], [0], [1], [0, 0, 1, 1], [], []>} : vector<16x32xf32>, vector<32x128xf32>, vector<16x128xf32> -> vector<16x128xf32>
    %c0_21 = arith.constant 0 : index
    %c0_22 = arith.constant 0 : index
    %24 = vector.load %arg9[%c0_21, %c0_22] : memref<16x1xf32, #tpu.memory_space<vmem>>, vector<16x1xf32>
    %25 = vector.broadcast %24 : vector<16x1xf32> to vector<16x128xf32>
    %26 = arith.addf %23, %25 : vector<16x128xf32>
    %cst_23 = arith.constant 0.000000e+00 : f32
    %27 = vector.broadcast %cst_23 : f32 to vector<16x128xf32>
    %28 = arith.maximumf %26, %27 : vector<16x128xf32>
    %c0_24 = arith.constant 0 : index
    %c0_25 = arith.constant 0 : index
    %29 = vector.load %arg10[%c0_24, %c0_25] : memref<4x16xf32, #tpu.memory_space<vmem>>, vector<4x16xf32>
    %cst_26 = arith.constant dense<0.000000e+00> : vector<4x128xf32>
    %30 = tpu.matmul %29, %28, %cst_26 {dimension_numbers = #tpu.dot_dimension_numbers<[1], [0], [0], [1], [0, 0, 1, 1], [], []>} : vector<4x16xf32>, vector<16x128xf32>, vector<4x128xf32> -> vector<4x128xf32>
    %c0_27 = arith.constant 0 : index
    %c0_28 = arith.constant 0 : index
    %31 = vector.load %arg11[%c0_27, %c0_28] : memref<4x1xf32, #tpu.memory_space<vmem>>, vector<4x1xf32>
    %32 = vector.broadcast %31 : vector<4x1xf32> to vector<4x128xf32>
    %33 = arith.addf %30, %32 : vector<4x128xf32>
    %c0_29 = arith.constant 0 : index
    %c0_30 = arith.constant 0 : index
    %34 = vector.load %arg12[%c0_29, %c0_30] : memref<4x128xf32, #tpu.memory_space<vmem>>, vector<4x128xf32>
    tpu.vector_store %arg12[%c0_29, %c0_30], %33 {strides = array<i32>} : memref<4x128xf32, #tpu.memory_space<vmem>>, vector<4x128xf32>,
    return
  }
  func.func @transform_0(%arg0: i32) -> (i32, i32) {
    %c0_i32 = arith.constant 0 : i32
    %c0_i32_0 = arith.constant 0 : i32
    return %c0_i32, %arg0 : i32, i32
  }
  func.func @transform_1(%arg0: i32) -> (i32, i32) {
    %c0_i32 = arith.constant 0 : i32
    %c0_i32_0 = arith.constant 0 : i32
    %c0_i32_1 = arith.constant 0 : i32
    return %c0_i32, %c0_i32_0 : i32, i32
  }
  func.func @transform_2(%arg0: i32) -> (i32, i32) {
    %c0_i32 = arith.constant 0 : i32
    %c0_i32_0 = arith.constant 0 : i32
    %c0_i32_1 = arith.constant 0 : i32
    return %c0_i32, %c0_i32_0 : i32, i32
  }
  func.func @transform_3(%arg0: i32) -> (i32, i32) {
    %c0_i32 = arith.constant 0 : i32
    %c0_i32_0 = arith.constant 0 : i32
    %c0_i32_1 = arith.constant 0 : i32
    return %c0_i32, %c0_i32_0 : i32, i32
  }
  func.func @transform_4(%arg0: i32) -> (i32, i32) {
    %c0_i32 = arith.constant 0 : i32
    %c0_i32_0 = arith.constant 0 : i32
    %c0_i32_1 = arith.constant 0 : i32
    return %c0_i32, %c0_i32_0 : i32, i32
  }
  func.func @transform_5(%arg0: i32) -> (i32, i32) {
    %c0_i32 = arith.constant 0 : i32
    %c0_i32_0 = arith.constant 0 : i32
    %c0_i32_1 = arith.constant 0 : i32
    return %c0_i32, %c0_i32_0 : i32, i32
  }
  func.func @transform_6(%arg0: i32) -> (i32, i32) {
    %c0_i32 = arith.constant 0 : i32
    %c0_i32_0 = arith.constant 0 : i32
    %c0_i32_1 = arith.constant 0 : i32
    return %c0_i32, %c0_i32_0 : i32, i32
  }
  func.func @transform_7(%arg0: i32) -> (i32, i32) {
    %c0_i32 = arith.constant 0 : i32
    %c0_i32_0 = arith.constant 0 : i32
    %c0_i32_1 = arith.constant 0 : i32
    return %c0_i32, %c0_i32_0 : i32, i32
  }
  func.func @transform_8(%arg0: i32) -> (i32, i32) {
    %c0_i32 = arith.constant 0 : i32
    %c0_i32_0 = arith.constant 0 : i32
    %c0_i32_1 = arith.constant 0 : i32
    return %c0_i32, %c0_i32_0 : i32, i32
  }
  func.func @transform_9(%arg0: i32) -> (i32, i32) {
    %c0_i32 = arith.constant 0 : i32
    %c0_i32_0 = arith.constant 0 : i32
    %c0_i32_1 = arith.constant 0 : i32
    return %c0_i32, %c0_i32_0 : i32, i32
  }
  func.func @transform_10(%arg0: i32) -> (i32, i32) {
    %c0_i32 = arith.constant 0 : i32
    %c0_i32_0 = arith.constant 0 : i32
    %c0_i32_1 = arith.constant 0 : i32
    return %c0_i32, %c0_i32_0 : i32, i32
  }
  func.func @transform_11(%arg0: i32) -> (i32, i32) {
    %c0_i32 = arith.constant 0 : i32
    %c0_i32_0 = arith.constant 0 : i32
    return %c0_i32, %arg0 : i32, i32
  }
}

</mosaic_0001>

<llo_original>
// kernel: tpu_custom_call.1
$region0: #{tpu_custom_call.1}
  #allocation0 [shape = 'u32[]', space=smem, size = 0x4, offset = 0x4, fixed_abs, tag = 'smem constant byte address 0x4 - core index']
  #allocation1 [shape = 'u32[144,128]{1,0:T(1,128)}', space=vmem, size = 0x12000, scoped, tag = 'internal scratch']
  %s0 = inlined_call_operand.vmem [shape: f32[8,128], index: 0, kind: input, shape index: {}]
  %s1 = inlined_call_operand.vmem [shape: f32[32,8], index: 1, kind: input, shape index: {}]
  %s2 = inlined_call_operand.vmem [shape: f32[32,1], index: 2, kind: input, shape index: {}]
  %s3 = inlined_call_operand.vmem [shape: f32[64,32], index: 3, kind: input, shape index: {}]
  %s4 = inlined_call_operand.vmem [shape: f32[64,1], index: 4, kind: input, shape index: {}]
  %s5 = inlined_call_operand.vmem [shape: f32[32,64], index: 5, kind: input, shape index: {}]
  %s6 = inlined_call_operand.vmem [shape: f32[32,1], index: 6, kind: input, shape index: {}]
  %s7 = inlined_call_operand.vmem [shape: f32[16,32], index: 7, kind: input, shape index: {}]
  %s8 = inlined_call_operand.vmem [shape: f32[16,1], index: 8, kind: input, shape index: {}]
  %s9 = inlined_call_operand.vmem [shape: f32[4,16], index: 9, kind: input, shape index: {}]
  %s10 = inlined_call_operand.vmem [shape: f32[4,1], index: 10, kind: input, shape index: {}]
  %s11 = inlined_call_operand.hbm [shape: f32[4,128], index: 11, kind: output, shape index: {}]
  %s12 = sld [smem:[#allocation0]]
  $region54: #{tpu_custom_call.1} parent=0
    _
  %s14 = ssub.s32 1, %s12
  %s15 = scalar_select 0, %s14, %s12
  $region1: #{tpu_custom_call.1} parent=0
    #allocation2 [shape = 'u8[2048]{0}', space=vmem, size = 0x800, scoped, tag = 'output window, operand 0, single buffered']
    #allocation3 [shape = 's32[1]{0}', space=sflag, size = 0x4, scoped, tag = 'scoped memory for tpu_custom_call.1']
    %16 = vsyncpa [#allocation3], 0
    // Predicated region
    $region2: #{tpu_custom_call.1} parent=1 // pred_check
      _
    $region3: #{tpu_custom_call.1} parent=1 // pred_check_branch
      %18 = sbr.rel (0) target = $region5
    $region4: #{tpu_custom_call.1} parent=1 // pred_region
      _
    $region5: #{tpu_custom_call.1} parent=1 // pred_fallthru
      _
    // Predicated region
    $region6: #{tpu_custom_call.1} parent=1 // pred_check
      _
    $region7: #{tpu_custom_call.1} parent=1 // pred_check_branch
      %20 = sbr.rel (0) target = $region9
    $region8: #{tpu_custom_call.1} parent=1 // pred_region
      _
    $region9: #{tpu_custom_call.1} parent=1 // pred_fallthru
      _
    // Predicated region
    $region10: #{tpu_custom_call.1} parent=1 // pred_check
      _
    $region11: #{tpu_custom_call.1} parent=1 // pred_check_branch
      %22 = sbr.rel (0) target = $region13
    $region12: #{tpu_custom_call.1} parent=1 // pred_region
      _
    $region13: #{tpu_custom_call.1} parent=1 // pred_fallthru
      _
    // Predicated region
    $region14: #{tpu_custom_call.1} parent=1 // pred_check
      _
    $region15: #{tpu_custom_call.1} parent=1 // pred_check_branch
      %24 = sbr.rel (0) target = $region17
    $region16: #{tpu_custom_call.1} parent=1 // pred_region
      _
    $region17: #{tpu_custom_call.1} parent=1 // pred_fallthru
      _
    // Predicated region
    $region18: #{tpu_custom_call.1} parent=1 // pred_check
      _
    $region19: #{tpu_custom_call.1} parent=1 // pred_check_branch
      %26 = sbr.rel (0) target = $region21
    $region20: #{tpu_custom_call.1} parent=1 // pred_region
      _
    $region21: #{tpu_custom_call.1} parent=1 // pred_fallthru
      _
    // Predicated region
    $region22: #{tpu_custom_call.1} parent=1 // pred_check
      _
    $region23: #{tpu_custom_call.1} parent=1 // pred_check_branch
      %28 = sbr.rel (0) target = $region25
    $region24: #{tpu_custom_call.1} parent=1 // pred_region
      _
    $region25: #{tpu_custom_call.1} parent=1 // pred_fallthru
      _
    // Predicated region
    $region26: #{tpu_custom_call.1} parent=1 // pred_check
      _
    $region27: #{tpu_custom_call.1} parent=1 // pred_check_branch
      %30 = sbr.rel (0) target = $region29
    $region28: #{tpu_custom_call.1} parent=1 // pred_region
      _
    $region29: #{tpu_custom_call.1} parent=1 // pred_fallthru
      _
    // Predicated region
    $region30: #{tpu_custom_call.1} parent=1 // pred_check
      _
    $region31: #{tpu_custom_call.1} parent=1 // pred_check_branch
      %32 = sbr.rel (0) target = $region33
    $region32: #{tpu_custom_call.1} parent=1 // pred_region
      _
    $region33: #{tpu_custom_call.1} parent=1 // pred_fallthru
      _
    // Predicated region
    $region34: #{tpu_custom_call.1} parent=1 // pred_check
      _
    $region35: #{tpu_custom_call.1} parent=1 // pred_check_branch
      %34 = sbr.rel (0) target = $region37
    $region36: #{tpu_custom_call.1} parent=1 // pred_region
      _
    $region37: #{tpu_custom_call.1} parent=1 // pred_fallthru
      _
    // Predicated region
    $region38: #{tpu_custom_call.1} parent=1 // pred_check
      _
    $region39: #{tpu_custom_call.1} parent=1 // pred_check_branch
      %36 = sbr.rel (0) target = $region41
    $region40: #{tpu_custom_call.1} parent=1 // pred_region
      _
    $region41: #{tpu_custom_call.1} parent=1 // pred_fallthru
      _
    // Predicated region
    $region42: #{tpu_custom_call.1} parent=1 // pred_check
      _
    $region43: #{tpu_custom_call.1} parent=1 // pred_check_branch
      %38 = sbr.rel (0) target = $region45
    $region44: #{tpu_custom_call.1} parent=1 // pred_region
      _
    $region45: #{tpu_custom_call.1} parent=1 // pred_fallthru
      _
    %v39 = vld [vmem:[%s0] sm:$0xff]
    %v40 = vld [vmem:[%s1] sm:$0xff]
    %v41 = vld [vmem:[%s1 + $0x8] sm:$0xff]
    %v42 = vld [vmem:[%s1 + $0x10] sm:$0xff]
    %v43 = vld [vmem:[%s1 + $0x18] sm:$0xff]
    %v44 = vld [vmem:[%s2] sm:$0xff]
    %v45 = vld [vmem:[%s2 + $0x8] sm:$0xff]
    %v46 = vld [vmem:[%s2 + $0x10] sm:$0xff]
    %v47 = vld [vmem:[%s2 + $0x18] sm:$0xff]
    %49 = vset.pattern.permute.xlu0 0
    %50 = vperm.xlu0 %49, %v44
    %v51 = vpop.permute.xlu0 %50
    %54 = vset.pattern.permute.xlu0 0
    %55 = vperm.xlu0 %54, %v45
    %v56 = vpop.permute.xlu0 %55
    %59 = vset.pattern.permute.xlu0 0
    %60 = vperm.xlu0 %59, %v46
    %v61 = vpop.permute.xlu0 %60
    %64 = vset.pattern.permute.xlu0 0
    %65 = vperm.xlu0 %64, %v47
    %v66 = vpop.permute.xlu0 %65
    %vm68 = vcmask 64512
    %v70 = vsel %vm68, %v40, 0
    %v73 = vsel %vm68, %v41, 0
    %v76 = vsel %vm68, %v42, 0
    %v79 = vsel %vm68, %v43, 0
    %81 = vmatprep.subr.mxu0 0.0
    %82 = vmatpush1.msra.mxu0 0.0
    %83 = vmatprep.subr.mxu0 0.0
    %84 = vmatpush1.msra.mxu0 0.0
    %85 = vmatprep.subr.mxu0 0.0
    %86 = vmatpush1.msra.mxu0 0.0
    %87 = vmatprep.subr.mxu0 0.0
    %88 = vmatpush1.msra.mxu0 0.0
    %89 = vmatprep.subr.mxu0 0.0
    %90 = vmatpush1.msra.mxu0 0.0
    %91 = vmatprep.subr.mxu0 0.0
    %92 = vmatpush1.msra.mxu0 0.0
    %93 = vmatprep.subr.mxu0 0.0
    %94 = vmatpush1.msra.mxu0 0.0
    %95 = vmatprep.subr.mxu0 0.0
    %96 = vmatpush1.msra.mxu0 0.0
    %97 = vmatprep.subr.mxu0 0.0
    %98 = vmatpush1.msra.mxu0 0.0
    %99 = vmatprep.subr.mxu0 0.0
    %100 = vmatpush1.msra.mxu0 0.0
    %101 = vmatprep.subr.mxu0 0.0
    %102 = vmatpush1.msra.mxu0 0.0
    %103 = vmatprep.subr.mxu0 0.0
    %104 = vmatpush1.msra.mxu0 0.0
    %105 = vmatprep.subr.mxu0 0.0
    %106 = vmatpush1.msra.mxu0 0.0
    %107 = vmatprep.subr.mxu0 0.0
    %108 = vmatpush1.msra.mxu0 0.0
    %109 = vmatprep.subr.mxu0 0.0
    %110 = vmatpush1.msra.mxu0 0.0
    %111 = vmatprep.subr.mxu0 0.0
    %112 = vmatpush1.msra.mxu0 %v39
    %113 = vmatprep.subr.mxu0 0.0
    %114 = vmatpush2.msra.mxu0 0.0
    %115 = vmatprep.subr.mxu0 0.0
    %116 = vmatpush2.msra.mxu0 0.0
    %117 = vmatprep.subr.mxu0 0.0
    %118 = vmatpush2.msra.mxu0 0.0
    %119 = vmatprep.subr.mxu0 0.0
    %120 = vmatpush2.msra.mxu0 0.0
    %121 = vmatprep.subr.mxu0 0.0
    %122 = vmatpush2.msra.mxu0 0.0
    %123 = vmatprep.subr.mxu0 0.0
    %124 = vmatpush2.msra.mxu0 0.0
    %125 = vmatprep.subr.mxu0 0.0
    %126 = vmatpush2.msra.mxu0 0.0
    %127 = vmatprep.subr.mxu0 0.0
    %128 = vmatpush2.msra.mxu0 0.0
    %129 = vmatprep.subr.mxu0 0.0
    %130 = vmatpush2.msra.mxu0 0.0
    %131 = vmatprep.subr.mxu0 0.0
    %132 = vmatpush2.msra.mxu0 0.0
    %133 = vmatprep.subr.mxu0 0.0
    %134 = vmatpush2.msra.mxu0 0.0
    %135 = vmatprep.subr.mxu0 0.0
    %136 = vmatpush2.msra.mxu0 0.0
    %137 = vmatprep.subr.mxu0 0.0
    %138 = vmatpush2.msra.mxu0 0.0
    %139 = vmatprep.subr.mxu0 0.0
    %140 = vmatpush2.msra.mxu0 0.0
    %141 = vmatprep.subr.mxu0 0.0
    %142 = vmatpush2.msra.mxu0 0.0
    %143 = vmatprep.subr.mxu0 0.0
    %144 = vmatpush2.msra.mxu0 0.0
    %145 = vmatprep.mubr.f32.mxu0 0.0
    %146 = vmatmul.mubr.f32.gmra.mxu0 %v70
    %v147 = vpop.f32.mrf.mxu0
    %v148 = vadd.f32 %v51, %v147
    %v149 = vpop.f32.mrf.mxu0
    %150 = vmatprep.mubr.f32.mxu0 0.0
    %151 = vmatmul.mubr.f32.gmra.mxu0 %v73
    %v152 = vpop.f32.mrf.mxu0
    %v153 = vadd.f32 %v56, %v152
    %v154 = vpop.f32.mrf.mxu0
    %155 = vmatprep.mubr.f32.mxu0 0.0
    %156 = vmatmul.mubr.f32.gmra.mxu0 %v76
    %v157 = vpop.f32.mrf.mxu0
    %v158 = vadd.f32 %v61, %v157
    %v159 = vpop.f32.mrf.mxu0
    %160 = vmatprep.mubr.f32.mxu0 0.0
    %161 = vmatmul.mubr.f32.gmra.mxu0 %v79
    %v162 = vpop.f32.mrf.mxu0
    %v163 = vadd.f32 %v66, %v162
    %v164 = vpop.f32.mrf.mxu0
    %165 = vdwg.mxu0
    %v166 = vmax.f32 %v148, 0.0
    %v167 = vmax.f32 %v153, 0.0
    %v168 = vmax.f32 %v158, 0.0
    %v169 = vmax.f32 %v163, 0.0
    %v170 = vld [vmem:[%s3] sm:$0xff]
    %v171 = vld [vmem:[%s3 + $0x8] sm:$0xff]
    %v172 = vld [vmem:[%s3 + $0x10] sm:$0xff]
    %v173 = vld [vmem:[%s3 + $0x18] sm:$0xff]
    %v174 = vld [vmem:[%s3 + $0x20] sm:$0xff]
    %v175 = vld [vmem:[%s3 + $0x28] sm:$0xff]
    %v176 = vld [vmem:[%s3 + $0x30] sm:$0xff]
    %v177 = vld [vmem:[%s3 + $0x38] sm:$0xff]
    %v178 = vld [vmem:[%s4] sm:$0xff]
    %v179 = vld [vmem:[%s4 + $0x8] sm:$0xff]
    %v180 = vld [vmem:[%s4 + $0x10] sm:$0xff]
    %v181 = vld [vmem:[%s4 + $0x18] sm:$0xff]
    %v182 = vld [vmem:[%s4 + $0x20] sm:$0xff]
    %v183 = vld [vmem:[%s4 + $0x28] sm:$0xff]
    %v184 = vld [vmem:[%s4 + $0x30] sm:$0xff]
    %v185 = vld [vmem:[%s4 + $0x38] sm:$0xff]
    %187 = vset.pattern.permute.xlu0 0
    %188 = vperm.xlu0 %187, %v178
    %v189 = vpop.permute.xlu0 %188
    %192 = vset.pattern.permute.xlu0 0
    %193 = vperm.xlu0 %192, %v179
    %v194 = vpop.permute.xlu0 %193
    %197 = vset.pattern.permute.xlu0 0
    %198 = vperm.xlu0 %197, %v180
    %v199 = vpop.permute.xlu0 %198
    %202 = vset.pattern.permute.xlu0 0
    %203 = vperm.xlu0 %202, %v181
    %v204 = vpop.permute.xlu0 %203
    %207 = vset.pattern.permute.xlu0 0
    %208 = vperm.xlu0 %207, %v182
    %v209 = vpop.permute.xlu0 %208
    %212 = vset.pattern.permute.xlu0 0
    %213 = vperm.xlu0 %212, %v183
    %v214 = vpop.permute.xlu0 %213
    %217 = vset.pattern.permute.xlu0 0
    %218 = vperm.xlu0 %217, %v184
    %v219 = vpop.permute.xlu0 %218
    %222 = vset.pattern.permute.xlu0 0
    %223 = vperm.xlu0 %222, %v185
    %v224 = vpop.permute.xlu0 %223
    %vm226 = vcmask 261120
    %v228 = vsel %vm226, %v170, 0
    %v231 = vsel %vm226, %v171, 0
    %v234 = vsel %vm226, %v172, 0
    %v237 = vsel %vm226, %v173, 0
    %v240 = vsel %vm226, %v174, 0
    %v243 = vsel %vm226, %v175, 0
    %v246 = vsel %vm226, %v176, 0
    %v249 = vsel %vm226, %v177, 0
    %251 = vmatprep.subr.mxu0 0.0
    %252 = vmatpush1.msra.mxu0 0.0
    %253 = vmatprep.subr.mxu0 0.0
    %254 = vmatpush1.msra.mxu0 0.0
    %255 = vmatprep.subr.mxu0 0.0
    %256 = vmatpush1.msra.mxu0 0.0
    %257 = vmatprep.subr.mxu0 0.0
    %258 = vmatpush1.msra.mxu0 0.0
    %259 = vmatprep.subr.mxu0 0.0
    %260 = vmatpush1.msra.mxu0 0.0
    %261 = vmatprep.subr.mxu0 0.0
    %262 = vmatpush1.msra.mxu0 0.0
    %263 = vmatprep.subr.mxu0 0.0
    %264 = vmatpush1.msra.mxu0 0.0
    %265 = vmatprep.subr.mxu0 0.0
    %266 = vmatpush1.msra.mxu0 0.0
    %267 = vmatprep.subr.mxu0 0.0
    %268 = vmatpush1.msra.mxu0 0.0
    %269 = vmatprep.subr.mxu0 0.0
    %270 = vmatpush1.msra.mxu0 0.0
    %271 = vmatprep.subr.mxu0 0.0
    %272 = vmatpush1.msra.mxu0 0.0
    %273 = vmatprep.subr.mxu0 0.0
    %274 = vmatpush1.msra.mxu0 0.0
    %275 = vmatprep.subr.mxu0 0.0
    %276 = vmatpush1.msra.mxu0 %v169
    %277 = vmatprep.subr.mxu0 0.0
    %278 = vmatpush1.msra.mxu0 %v168
    %279 = vmatprep.subr.mxu0 0.0
    %280 = vmatpush1.msra.mxu0 %v167
    %281 = vmatprep.subr.mxu0 0.0
    %282 = vmatpush1.msra.mxu0 %v166
    %283 = vmatprep.subr.mxu0 0.0
    %284 = vmatpush2.msra.mxu0 0.0
    %285 = vmatprep.subr.mxu0 0.0
    %286 = vmatpush2.msra.mxu0 0.0
    %287 = vmatprep.subr.mxu0 0.0
    %288 = vmatpush2.msra.mxu0 0.0
    %289 = vmatprep.subr.mxu0 0.0
    %290 = vmatpush2.msra.mxu0 0.0
    %291 = vmatprep.subr.mxu0 0.0
    %292 = vmatpush2.msra.mxu0 0.0
    %293 = vmatprep.subr.mxu0 0.0
    %294 = vmatpush2.msra.mxu0 0.0
    %295 = vmatprep.subr.mxu0 0.0
    %296 = vmatpush2.msra.mxu0 0.0
    %297 = vmatprep.subr.mxu0 0.0
    %298 = vmatpush2.msra.mxu0 0.0
    %299 = vmatprep.subr.mxu0 0.0
    %300 = vmatpush2.msra.mxu0 0.0
    %301 = vmatprep.subr.mxu0 0.0
    %302 = vmatpush2.msra.mxu0 0.0
    %303 = vmatprep.subr.mxu0 0.0
    %304 = vmatpush2.msra.mxu0 0.0
    %305 = vmatprep.subr.mxu0 0.0
    %306 = vmatpush2.msra.mxu0 0.0
    %307 = vmatprep.subr.mxu0 0.0
    %308 = vmatpush2.msra.mxu0 0.0
    %309 = vmatprep.subr.mxu0 0.0
    %310 = vmatpush2.msra.mxu0 0.0
    %311 = vmatprep.subr.mxu0 0.0
    %312 = vmatpush2.msra.mxu0 0.0
    %313 = vmatprep.subr.mxu0 0.0
    %314 = vmatpush2.msra.mxu0 0.0
    %315 = vmatprep.mubr.f32.mxu0 0.0
    %316 = vmatmul.mubr.f32.gmra.mxu0 %v228
    %v317 = vpop.f32.mrf.mxu0
    %v318 = vadd.f32 %v189, %v317
    %v319 = vpop.f32.mrf.mxu0
    %320 = vmatprep.mubr.f32.mxu0 0.0
    %321 = vmatmul.mubr.f32.gmra.mxu0 %v231
    %v322 = vpop.f32.mrf.mxu0
    %v323 = vadd.f32 %v194, %v322
    %v324 = vpop.f32.mrf.mxu0
    %325 = vmatprep.mubr.f32.mxu0 0.0
    %326 = vmatmul.mubr.f32.gmra.mxu0 %v234
    %v327 = vpop.f32.mrf.mxu0
    %v328 = vadd.f32 %v199, %v327
    %v329 = vpop.f32.mrf.mxu0
    %330 = vmatprep.mubr.f32.mxu0 0.0
    %331 = vmatmul.mubr.f32.gmra.mxu0 %v237
    %v332 = vpop.f32.mrf.mxu0
    %v333 = vadd.f32 %v204, %v332
    %v334 = vpop.f32.mrf.mxu0
    %335 = vmatprep.mubr.f32.mxu0 0.0
    %336 = vmatmul.mubr.f32.gmra.mxu0 %v240
    %v337 = vpop.f32.mrf.mxu0
    %v338 = vadd.f32 %v209, %v337
    %v339 = vpop.f32.mrf.mxu0
    %340 = vmatprep.mubr.f32.mxu0 0.0
    %341 = vmatmul.mubr.f32.gmra.mxu0 %v243
    %v342 = vpop.f32.mrf.mxu0
    %v343 = vadd.f32 %v214, %v342
    %v344 = vpop.f32.mrf.mxu0
    %345 = vmatprep.mubr.f32.mxu0 0.0
    %346 = vmatmul.mubr.f32.gmra.mxu0 %v246
    %v347 = vpop.f32.mrf.mxu0
    %v348 = vadd.f32 %v219, %v347
    %v349 = vpop.f32.mrf.mxu0
    %350 = vmatprep.mubr.f32.mxu0 0.0
    %351 = vmatmul.mubr.f32.gmra.mxu0 %v249
    %v352 = vpop.f32.mrf.mxu0
    %v353 = vadd.f32 %v224, %v352
    %v354 = vpop.f32.mrf.mxu0
    %355 = vdwg.mxu0
    %v356 = vmax.f32 %v318, 0.0
    %v357 = vmax.f32 %v323, 0.0
    %v358 = vmax.f32 %v328, 0.0
    %v359 = vmax.f32 %v333, 0.0
    %v360 = vmax.f32 %v338, 0.0
    %v361 = vmax.f32 %v343, 0.0
    %v362 = vmax.f32 %v348, 0.0
    %v363 = vmax.f32 %v353, 0.0
    %v364 = vld [vmem:[%s5] sm:$0xff]
    %v365 = vld [vmem:[%s5 + $0x8] sm:$0xff]
    %v366 = vld [vmem:[%s5 + $0x10] sm:$0xff]
    %v367 = vld [vmem:[%s5 + $0x18] sm:$0xff]
    %v368 = vld [vmem:[%s6] sm:$0xff]
    %v369 = vld [vmem:[%s6 + $0x8] sm:$0xff]
    %v370 = vld [vmem:[%s6 + $0x10] sm:$0xff]
    %v371 = vld [vmem:[%s6 + $0x18] sm:$0xff]
    %373 = vset.pattern.permute.xlu0 0
    %374 = vperm.xlu0 %373, %v368
    %v375 = vpop.permute.xlu0 %374
    %378 = vset.pattern.permute.xlu0 0
    %379 = vperm.xlu0 %378, %v369
    %v380 = vpop.permute.xlu0 %379
    %383 = vset.pattern.permute.xlu0 0
    %384 = vperm.xlu0 %383, %v370
    %v385 = vpop.permute.xlu0 %384
    %388 = vset.pattern.permute.xlu0 0
    %389 = vperm.xlu0 %388, %v371
    %v390 = vpop.permute.xlu0 %389
    %vm392 = vcmask 523264
    %v394 = vsel %vm392, %v364, 0
    %v397 = vsel %vm392, %v365, 0
    %v400 = vsel %vm392, %v366, 0
    %v403 = vsel %vm392, %v367, 0
    %405 = vmatprep.subr.mxu0 0.0
    %406 = vmatpush1.msra.mxu0 0.0
    %407 = vmatprep.subr.mxu0 0.0
    %408 = vmatpush1.msra.mxu0 0.0
    %409 = vmatprep.subr.mxu0 0.0
    %410 = vmatpush1.msra.mxu0 0.0
    %411 = vmatprep.subr.mxu0 0.0
    %412 = vmatpush1.msra.mxu0 0.0
    %413 = vmatprep.subr.mxu0 0.0
    %414 = vmatpush1.msra.mxu0 0.0
    %415 = vmatprep.subr.mxu0 0.0
    %416 = vmatpush1.msra.mxu0 0.0
    %417 = vmatprep.subr.mxu0 0.0
    %418 = vmatpush1.msra.mxu0 0.0
    %419 = vmatprep.subr.mxu0 0.0
    %420 = vmatpush1.msra.mxu0 0.0
    %421 = vmatprep.subr.mxu0 0.0
    %422 = vmatpush1.msra.mxu0 %v363
    %423 = vmatprep.subr.mxu0 0.0
    %424 = vmatpush1.msra.mxu0 %v362
    %425 = vmatprep.subr.mxu0 0.0
    %426 = vmatpush1.msra.mxu0 %v361
    %427 = vmatprep.subr.mxu0 0.0
    %428 = vmatpush1.msra.mxu0 %v360
    %429 = vmatprep.subr.mxu0 0.0
    %430 = vmatpush1.msra.mxu0 %v359
    %431 = vmatprep.subr.mxu0 0.0
    %432 = vmatpush1.msra.mxu0 %v358
    %433 = vmatprep.subr.mxu0 0.0
    %434 = vmatpush1.msra.mxu0 %v357
    %435 = vmatprep.subr.mxu0 0.0
    %436 = vmatpush1.msra.mxu0 %v356
    %437 = vmatprep.subr.mxu0 0.0
    %438 = vmatpush2.msra.mxu0 0.0
    %439 = vmatprep.subr.mxu0 0.0
    %440 = vmatpush2.msra.mxu0 0.0
    %441 = vmatprep.subr.mxu0 0.0
    %442 = vmatpush2.msra.mxu0 0.0
    %443 = vmatprep.subr.mxu0 0.0
    %444 = vmatpush2.msra.mxu0 0.0
    %445 = vmatprep.subr.mxu0 0.0
    %446 = vmatpush2.msra.mxu0 0.0
    %447 = vmatprep.subr.mxu0 0.0
    %448 = vmatpush2.msra.mxu0 0.0
    %449 = vmatprep.subr.mxu0 0.0
    %450 = vmatpush2.msra.mxu0 0.0
    %451 = vmatprep.subr.mxu0 0.0
    %452 = vmatpush2.msra.mxu0 0.0
    %453 = vmatprep.subr.mxu0 0.0
    %454 = vmatpush2.msra.mxu0 0.0
    %455 = vmatprep.subr.mxu0 0.0
    %456 = vmatpush2.msra.mxu0 0.0
    %457 = vmatprep.subr.mxu0 0.0
    %458 = vmatpush2.msra.mxu0 0.0
    %459 = vmatprep.subr.mxu0 0.0
    %460 = vmatpush2.msra.mxu0 0.0
    %461 = vmatprep.subr.mxu0 0.0
    %462 = vmatpush2.msra.mxu0 0.0
    %463 = vmatprep.subr.mxu0 0.0
    %464 = vmatpush2.msra.mxu0 0.0
    %465 = vmatprep.subr.mxu0 0.0
    %466 = vmatpush2.msra.mxu0 0.0
    %467 = vmatprep.subr.mxu0 0.0
    %468 = vmatpush2.msra.mxu0 0.0
    %469 = vmatprep.mubr.f32.mxu0 0.0
    %470 = vmatmul.mubr.f32.gmra.mxu0 %v394
    %v471 = vpop.f32.mrf.mxu0
    %v472 = vadd.f32 %v375, %v471
    %v473 = vpop.f32.mrf.mxu0
    %474 = vmatprep.mubr.f32.mxu0 0.0
    %475 = vmatmul.mubr.f32.gmra.mxu0 %v397
    %v476 = vpop.f32.mrf.mxu0
    %v477 = vadd.f32 %v380, %v476
    %v478 = vpop.f32.mrf.mxu0
    %479 = vmatprep.mubr.f32.mxu0 0.0
    %480 = vmatmul.mubr.f32.gmra.mxu0 %v400
    %v481 = vpop.f32.mrf.mxu0
    %v482 = vadd.f32 %v385, %v481
    %v483 = vpop.f32.mrf.mxu0
    %484 = vmatprep.mubr.f32.mxu0 0.0
    %485 = vmatmul.mubr.f32.gmra.mxu0 %v403
    %v486 = vpop.f32.mrf.mxu0
    %v487 = vadd.f32 %v390, %v486
    %v488 = vpop.f32.mrf.mxu0
    %489 = vdwg.mxu0
    %v490 = vmax.f32 %v472, 0.0
    %v491 = vmax.f32 %v477, 0.0
    %v492 = vmax.f32 %v482, 0.0
    %v493 = vmax.f32 %v487, 0.0
    %v494 = vld [vmem:[%s7] sm:$0xff]
    %v495 = vld [vmem:[%s7 + $0x8] sm:$0xff]
    %v496 = vld [vmem:[%s8] sm:$0xff]
    %v497 = vld [vmem:[%s8 + $0x8] sm:$0xff]
    %499 = vset.pattern.permute.xlu0 0
    %500 = vperm.xlu0 %499, %v496
    %v501 = vpop.permute.xlu0 %500
    %504 = vset.pattern.permute.xlu0 0
    %505 = vperm.xlu0 %504, %v497
    %v506 = vpop.permute.xlu0 %505
    %v509 = vsel %vm226, %v494, 0
    %v512 = vsel %vm226, %v495, 0
    %514 = vmatprep.subr.mxu0 0.0
    %515 = vmatpush1.msra.mxu0 0.0
    %516 = vmatprep.subr.mxu0 0.0
    %517 = vmatpush1.msra.mxu0 0.0
    %518 = vmatprep.subr.mxu0 0.0
    %519 = vmatpush1.msra.mxu0 0.0
    %520 = vmatprep.subr.mxu0 0.0
    %521 = vmatpush1.msra.mxu0 0.0
    %522 = vmatprep.subr.mxu0 0.0
    %523 = vmatpush1.msra.mxu0 0.0
    %524 = vmatprep.subr.mxu0 0.0
    %525 = vmatpush1.msra.mxu0 0.0
    %526 = vmatprep.subr.mxu0 0.0
    %527 = vmatpush1.msra.mxu0 0.0
    %528 = vmatprep.subr.mxu0 0.0
    %529 = vmatpush1.msra.mxu0 0.0
    %530 = vmatprep.subr.mxu0 0.0
    %531 = vmatpush1.msra.mxu0 0.0
    %532 = vmatprep.subr.mxu0 0.0
    %533 = vmatpush1.msra.mxu0 0.0
    %534 = vmatprep.subr.mxu0 0.0
    %535 = vmatpush1.msra.mxu0 0.0
    %536 = vmatprep.subr.mxu0 0.0
    %537 = vmatpush1.msra.mxu0 0.0
    %538 = vmatprep.subr.mxu0 0.0
    %539 = vmatpush1.msra.mxu0 %v493
    %540 = vmatprep.subr.mxu0 0.0
    %541 = vmatpush1.msra.mxu0 %v492
    %542 = vmatprep.subr.mxu0 0.0
    %543 = vmatpush1.msra.mxu0 %v491
    %544 = vmatprep.subr.mxu0 0.0
    %545 = vmatpush1.msra.mxu0 %v490
    %546 = vmatprep.subr.mxu0 0.0
    %547 = vmatpush2.msra.mxu0 0.0
    %548 = vmatprep.subr.mxu0 0.0
    %549 = vmatpush2.msra.mxu0 0.0
    %550 = vmatprep.subr.mxu0 0.0
    %551 = vmatpush2.msra.mxu0 0.0
    %552 = vmatprep.subr.mxu0 0.0
    %553 = vmatpush2.msra.mxu0 0.0
    %554 = vmatprep.subr.mxu0 0.0
    %555 = vmatpush2.msra.mxu0 0.0
    %556 = vmatprep.subr.mxu0 0.0
    %557 = vmatpush2.msra.mxu0 0.0
    %558 = vmatprep.subr.mxu0 0.0
    %559 = vmatpush2.msra.mxu0 0.0
    %560 = vmatprep.subr.mxu0 0.0
    %561 = vmatpush2.msra.mxu0 0.0
    %562 = vmatprep.subr.mxu0 0.0
    %563 = vmatpush2.msra.mxu0 0.0
    %564 = vmatprep.subr.mxu0 0.0
    %565 = vmatpush2.msra.mxu0 0.0
    %566 = vmatprep.subr.mxu0 0.0
    %567 = vmatpush2.msra.mxu0 0.0
    %568 = vmatprep.subr.mxu0 0.0
    %569 = vmatpush2.msra.mxu0 0.0
    %570 = vmatprep.subr.mxu0 0.0
    %571 = vmatpush2.msra.mxu0 0.0
    %572 = vmatprep.subr.mxu0 0.0
    %573 = vmatpush2.msra.mxu0 0.0
    %574 = vmatprep.subr.mxu0 0.0
    %575 = vmatpush2.msra.mxu0 0.0
    %576 = vmatprep.subr.mxu0 0.0
    %577 = vmatpush2.msra.mxu0 0.0
    %578 = vmatprep.mubr.f32.mxu0 0.0
    %579 = vmatmul.mubr.f32.gmra.mxu0 %v509
    %v580 = vpop.f32.mrf.mxu0
    %v581 = vadd.f32 %v501, %v580
    %v582 = vpop.f32.mrf.mxu0
    %583 = vmatprep.mubr.f32.mxu0 0.0
    %584 = vmatmul.mubr.f32.gmra.mxu0 %v512
    %v585 = vpop.f32.mrf.mxu0
    %v586 = vadd.f32 %v506, %v585
    %v587 = vpop.f32.mrf.mxu0
    %588 = vdwg.mxu0
    %v589 = vmax.f32 %v581, 0.0
    %v590 = vmax.f32 %v586, 0.0
    %v591 = vld [vmem:[%s9] sm:$0xf]
    %v592 = vld [vmem:[%s10] sm:$0xf]
    %594 = vset.pattern.permute.xlu0 0
    %595 = vperm.xlu0 %594, %v592
    %v596 = vpop.permute.xlu0 %595
    %vm598 = vcmask 130048
    %v600 = vsel %vm598, %v591, 0
    %602 = vmatprep.subr.mxu0 0.0
    %603 = vmatpush1.msra.mxu0 0.0
    %604 = vmatprep.subr.mxu0 0.0
    %605 = vmatpush1.msra.mxu0 0.0
    %606 = vmatprep.subr.mxu0 0.0
    %607 = vmatpush1.msra.mxu0 0.0
    %608 = vmatprep.subr.mxu0 0.0
    %609 = vmatpush1.msra.mxu0 0.0
    %610 = vmatprep.subr.mxu0 0.0
    %611 = vmatpush1.msra.mxu0 0.0
    %612 = vmatprep.subr.mxu0 0.0
    %613 = vmatpush1.msra.mxu0 0.0
    %614 = vmatprep.subr.mxu0 0.0
    %615 = vmatpush1.msra.mxu0 0.0
    %616 = vmatprep.subr.mxu0 0.0
    %617 = vmatpush1.msra.mxu0 0.0
    %618 = vmatprep.subr.mxu0 0.0
    %619 = vmatpush1.msra.mxu0 0.0
    %620 = vmatprep.subr.mxu0 0.0
    %621 = vmatpush1.msra.mxu0 0.0
    %622 = vmatprep.subr.mxu0 0.0
    %623 = vmatpush1.msra.mxu0 0.0
    %624 = vmatprep.subr.mxu0 0.0
    %625 = vmatpush1.msra.mxu0 0.0
    %626 = vmatprep.subr.mxu0 0.0
    %627 = vmatpush1.msra.mxu0 0.0
    %628 = vmatprep.subr.mxu0 0.0
    %629 = vmatpush1.msra.mxu0 0.0
    %630 = vmatprep.subr.mxu0 0.0
    %631 = vmatpush1.msra.mxu0 %v590
    %632 = vmatprep.subr.mxu0 0.0
    %633 = vmatpush1.msra.mxu0 %v589
    %634 = vmatprep.subr.mxu0 0.0
    %635 = vmatpush2.msra.mxu0 0.0
    %636 = vmatprep.subr.mxu0 0.0
    %637 = vmatpush2.msra.mxu0 0.0
    %638 = vmatprep.subr.mxu0 0.0
    %639 = vmatpush2.msra.mxu0 0.0
    %640 = vmatprep.subr.mxu0 0.0
    %641 = vmatpush2.msra.mxu0 0.0
    %642 = vmatprep.subr.mxu0 0.0
    %643 = vmatpush2.msra.mxu0 0.0
    %644 = vmatprep.subr.mxu0 0.0
    %645 = vmatpush2.msra.mxu0 0.0
    %646 = vmatprep.subr.mxu0 0.0
    %647 = vmatpush2.msra.mxu0 0.0
    %648 = vmatprep.subr.mxu0 0.0
    %649 = vmatpush2.msra.mxu0 0.0
    %650 = vmatprep.subr.mxu0 0.0
    %651 = vmatpush2.msra.mxu0 0.0
    %652 = vmatprep.subr.mxu0 0.0
    %653 = vmatpush2.msra.mxu0 0.0
    %654 = vmatprep.subr.mxu0 0.0
    %655 = vmatpush2.msra.mxu0 0.0
    %656 = vmatprep.subr.mxu0 0.0
    %657 = vmatpush2.msra.mxu0 0.0
    %658 = vmatprep.subr.mxu0 0.0
    %659 = vmatpush2.msra.mxu0 0.0
    %660 = vmatprep.subr.mxu0 0.0
    %661 = vmatpush2.msra.mxu0 0.0
    %662 = vmatprep.subr.mxu0 0.0
    %663 = vmatpush2.msra.mxu0 0.0
    %664 = vmatprep.subr.mxu0 0.0
    %665 = vmatpush2.msra.mxu0 0.0
    %666 = vmatprep.mubr.f32.mxu0 0.0
    %667 = vmatmul.mubr.f32.gmra.mxu0 %v600
    %v668 = vpop.f32.mrf.mxu0
    %v669 = vadd.f32 %v596, %v668
    %v670 = vpop.f32.mrf.mxu0
    %671 = vdwg.mxu0
    %672 = vst [vmem:[#allocation2] sm:$0xf] %v669
    // Predicated region
    $region46: #{tpu_custom_call.1} parent=1 // pred_check
      _
    $region47: #{tpu_custom_call.1} parent=1 // pred_check_branch
      %674 = sbr.rel (0) target = $region49
    $region48: #{tpu_custom_call.1} parent=1 // pred_region
      %s676 = ssub.s32 64, 64
      %677 = vsyncadd [#allocation3], %s676
      %s679 = sshll.u32 [#allocation2], 4
      %s680 = int_to_ptr.vmem [resolvable:$true] %s679
      %682 = dma.vmem_to_hbm [thread:$0]  %s680, 64, %s11, [#allocation3]
    $region49: #{tpu_custom_call.1} parent=1 // pred_fallthru
      _
    // Predicated region
    $region50: #{tpu_custom_call.1} parent=1 // pred_check
      _
    $region51: #{tpu_custom_call.1} parent=1 // pred_check_branch
      %684 = sbr.rel (0) target = $region53
    $region52: #{tpu_custom_call.1} parent=1 // pred_region
      %685 = dma.done [#allocation3], 64
    $region53: #{tpu_custom_call.1} parent=1 // pred_fallthru
      _
    %686 = vsyncpa [#allocation3], 1

</llo_original>
